<compile_context>
chip_gen: v5e
topology: v5e:2x2
jax: 0.10.0
libtpu: 0.0.40
codegen_flags: <defaults>
</compile_context>

<pallas_src>
import functools

import jax
import jax.numpy as jnp
from jax.experimental import pallas as pl
from jax.experimental.pallas import tpu as pltpu


def siglip_attention_kernel(
    x_ref,       # (1, S, D)                input block for batch b
    wqkv_ref,    # (H/G, D, G*3*hd)         resident fused qkv weights (W^T)
    bqkv_ref,    # (H/G, 1, G*3*hd)         resident fused qkv biases
    wo_ref,      # (H/G, G*hd, D)           resident out-proj weights (Wo^T rows)
    bo_ref,      # (1, D)                   out-proj bias
    out_ref,     # (1, S, D)                attn_output block for batch b
    *rest,       # [attnw_ref (1, G, S, S)], acc_ref (S, D) f32 scratch
    head_dim,
    group_size,
    with_attnw,
):
    if with_attnw:
        attnw_ref, acc_ref = rest
    else:
        (acc_ref,) = rest

    g = pl.program_id(1)
    hd = head_dim

    x = x_ref[0]                        # (S, D), model dtype
    w_qkv = wqkv_ref[g]                 # (D, G*3*hd)
    b_qkv = bqkv_ref[g]                 # (1, G*3*hd)

    # One fused projection for all of this group's q/k/v (MXU, f32 accumulate).
    # NOTE: the 1/sqrt(hd) scale is already folded into the q columns.
    proj = jnp.dot(x, w_qkv, preferred_element_type=jnp.float32) + b_qkv

    ctx_parts = []
    for j in range(group_size):
        base = j * 3 * hd
        # Match PyTorch: projection outputs live in the model dtype.
        q = proj[:, base:base + hd].astype(x.dtype)
        k = proj[:, base + hd:base + 2 * hd].astype(x.dtype)
        v = proj[:, base + 2 * hd:base + 3 * hd].astype(x.dtype)

        # scores = q @ k^T   (S, S), f32 accumulation (scale pre-folded).
        scores = jax.lax.dot_general(
            q, k,
            dimension_numbers=(((1,), (1,)), ((), ())),
            preferred_element_type=jnp.float32,
        )

        # softmax in f32 (matches F.softmax(..., dtype=torch.float32)).
        scores = scores - jnp.max(scores, axis=-1, keepdims=True)
        p = jnp.exp(scores)
        inv = pl.reciprocal(jnp.sum(p, axis=-1, keepdims=True), approx=False)

        if with_attnw:
            # Single f32 -> dtype cast reused for both the store and p @ v.
            p_lo = (p * inv).astype(x.dtype)
            attnw_ref[0, j] = p_lo
            ctx = jnp.dot(p_lo, v, preferred_element_type=jnp.float32)
        else:
            # Deferred normalization: scale the small (S, hd) context instead
            # of the (S, S) probabilities; no attn-weight writeback at all.
            ctx = jnp.dot(p.astype(x.dtype), v,
                          preferred_element_type=jnp.float32) * inv

        ctx_parts.append(ctx.astype(wo_ref.dtype))

    if group_size == 1:
        ctx_group = ctx_parts[0]
    else:
        ctx_group = jnp.concatenate(ctx_parts, axis=-1)   # (S, G*hd)

    # This group's contribution to out_proj: one matmul with K = G*hd.
    contrib = jnp.dot(ctx_group, wo_ref[g],
                      preferred_element_type=jnp.float32)  # (S, D)

    @pl.when(g == 0)
    def _():
        acc_ref[...] = jnp.broadcast_to(
            bo_ref[...].astype(jnp.float32), acc_ref.shape)

    acc_ref[...] += contrib

    # Only materialize the output on the last head-group (accumulator finalize).
    @pl.when(g == pl.num_programs(1) - 1)
    def _():
        out_ref[0] = acc_ref[...].astype(out_ref.dtype)


def siglip_vision_attention(hidden_states, wq, bq, wk, bk, wv, bv, wo, bo,
                            *, num_heads, group_size=None,
                            return_attn_weights=True):
    """hidden_states: (B, S, D). w*: (D, D) torch nn.Linear layout. b*: (D,)."""
    B, S, D = hidden_states.shape
    assert D % num_heads == 0, "hidden_size must be divisible by num_heads"
    hd = D // num_heads
    scale = float(hd) ** -0.5
    dtype = hidden_states.dtype

    if group_size is None:
        group_size = 2 if num_heads % 2 == 0 else 1
    assert num_heads % group_size == 0, "num_heads must be divisible by group_size"
    G = group_size
    n_groups = num_heads // G

    # ---- init-time weight layout (pure plumbing, hoistable) -----------------
    # Fold the softmax scale into the q projection.
    wq_s = (wq * scale).astype(wq.dtype)
    bq_s = (bq * scale).astype(bq.dtype)

    def wt_heads(w):  # (D_out, D_in) nn.Linear -> per-head W^T slices (H, D, hd)
        return w.T.reshape(D, num_heads, hd).transpose(1, 0, 2)

    def b_heads(b):   # (D,) -> (H, hd)
        return b.reshape(num_heads, hd)

    # Fused qkv weights: (H, D, 3, hd) -> grouped (H/G, D, G*3*hd).
    w_qkv = jnp.stack([wt_heads(wq_s), wt_heads(wk), wt_heads(wv)], axis=2)
    w_qkv = w_qkv.reshape(n_groups, G, D, 3, hd).transpose(0, 2, 1, 3, 4)
    w_qkv = w_qkv.reshape(n_groups, D, G * 3 * hd)

    b_qkv = jnp.stack([b_heads(bq_s), b_heads(bk), b_heads(bv)], axis=1)  # (H,3,hd)
    b_qkv = b_qkv.reshape(n_groups, G, 3, hd).reshape(n_groups, 1, G * 3 * hd)

    # out_proj: rows of Wo^T indexed by (head, hd) -> grouped (H/G, G*hd, D).
    wo_g = wo.T.reshape(num_heads, hd, D).reshape(n_groups, G * hd, D)
    bo_2d = bo.reshape(1, D)
    # -------------------------------------------------------------------------

    grid = (B, n_groups)

    # Weights / biases are passed with a constant index_map so they are fetched
    # into VMEM once and stay resident for the whole launch.
    in_specs = [
        pl.BlockSpec((1, S, D), lambda b, g: (b, 0, 0)),                    # x
        pl.BlockSpec((n_groups, D, G * 3 * hd), lambda b, g: (0, 0, 0)),    # Wqkv
        pl.BlockSpec((n_groups, 1, G * 3 * hd), lambda b, g: (0, 0, 0)),    # bqkv
        pl.BlockSpec((n_groups, G * hd, D), lambda b, g: (0, 0, 0)),        # Wo
        pl.BlockSpec((1, D), lambda b, g: (0, 0)),                          # bo
    ]

    out_shapes = [jax.ShapeDtypeStruct((B, S, D), dtype)]
    out_specs = [pl.BlockSpec((1, S, D), lambda b, g: (b, 0, 0))]
    if return_attn_weights:
        out_shapes.append(jax.ShapeDtypeStruct((B, num_heads, S, S), dtype))
        out_specs.append(pl.BlockSpec((1, G, S, S), lambda b, g: (b, g, 0, 0)))

    flops = 8 * B * S * D * D + 4 * B * S * S * D
    bytes_accessed = (
        (hidden_states.size + 4 * D * D + 4 * D + B * S * D)
        * hidden_states.dtype.itemsize
    )
    if return_attn_weights:
        bytes_accessed += B * num_heads * S * S * hidden_states.dtype.itemsize
    cost = pl.CostEstimate(
        flops=int(flops),
        transcendentals=int(B * num_heads * S * S),
        bytes_accessed=int(bytes_accessed),
    )

    results = pl.pallas_call(
        functools.partial(
            siglip_attention_kernel,
            head_dim=hd,
            group_size=G,
            with_attnw=return_attn_weights,
        ),
        out_shape=tuple(out_shapes),
        grid_spec=pltpu.PrefetchScalarGridSpec(
            num_scalar_prefetch=0,
            grid=grid,
            in_specs=in_specs,
            out_specs=out_specs,
            scratch_shapes=[pltpu.VMEM((S, D), jnp.float32)],
        ),
        compiler_params=pltpu.CompilerParams(
            dimension_semantics=("parallel", "arbitrary"),
            # TODO(synk): tune per chip at real Siglip shapes (~48 MB on v7x,
            # larger on v5e/v6e); ample for the self-test shapes.
            vmem_limit_bytes=64 * 1024 * 1024,
        ),
        cost_estimate=cost,
    )(hidden_states, w_qkv, b_qkv, wo_g, bo_2d)

    out = results[0]
    attn_w = results[1] if return_attn_weights else None
    return out, attn_w


def _reference(x, wq, bq, wk, bk, wv, bv, wo, bo, num_heads):
    B, S, D = x.shape
    hd = D // num_heads
    q = x @ wq.T + bq
    k = x @ wk.T + bk
    v = x @ wv.T + bv

    def split(t):
        return t.reshape(B, S, num_heads, hd).transpose(0, 2, 1, 3)

    q, k, v = split(q), split(k), split(v)
    scale = float(hd) ** -0.5
    s = jnp.einsum("bhqd,bhkd->bhqk", q, k) * scale
    p = jax.nn.softmax(s.astype(jnp.float32), axis=-1).astype(x.dtype)
    ctx = jnp.einsum("bhqk,bhkd->bhqd", p, v)
    ctx = ctx.transpose(0, 2, 1, 3).reshape(B, S, D)
    out = ctx @ wo.T + bo
    return out, p


if __name__ == "__main__":
    # Small SiglipVisionConfig-like sizes: hidden_size=32, num_heads=4, seq=8
    B, S, D, NH = 2, 8, 32, 4
    key = jax.random.PRNGKey(0)
    kx, k1, k2, k3, k4, k5, k6, k7, k8 = jax.random.split(key, 9)

    x = jax.random.normal(kx, (B, S, D), dtype=jnp.float32)
    # nn.Linear weight shapes: (out_features, in_features) = (D, D); bias (D,)
    wq = jax.random.normal(k1, (D, D), dtype=jnp.float32) * 0.05
    bq = jax.random.normal(k2, (D,), dtype=jnp.float32) * 0.01
    wk = jax.random.normal(k3, (D, D), dtype=jnp.float32) * 0.05
    bk = jax.random.normal(k4, (D,), dtype=jnp.float32) * 0.01
    wv = jax.random.normal(k5, (D, D), dtype=jnp.float32) * 0.05
    bv = jax.random.normal(k6, (D,), dtype=jnp.float32) * 0.01
    wo = jax.random.normal(k7, (D, D), dtype=jnp.float32) * 0.05
    bo = jax.random.normal(k8, (D,), dtype=jnp.float32) * 0.01

    ref_out, ref_w = _reference(x, wq, bq, wk, bk, wv, bv, wo, bo, NH)

    # Full path (returns attention weights, like the PyTorch module).
    out, attn_w = siglip_vision_attention(
        x, wq, bq, wk, bk, wv, bv, wo, bo, num_heads=NH, return_attn_weights=True
    )
    out = jax.block_until_ready(out)
    attn_w = jax.block_until_ready(attn_w)

    assert out.shape == (B, S, D)
    assert attn_w.shape == (B, NH, S, S)
    assert jnp.allclose(out, ref_out, atol=1e-4, rtol=1e-4), "attn_output mismatch"
    assert jnp.allclose(attn_w, ref_w, atol=1e-4, rtol=1e-4), "attn_weights mismatch"

    # Fast path: skip attention-weight writeback (output_attentions=False).
    out2, none_w = siglip_vision_attention(
        x, wq, bq, wk, bk, wv, bv, wo, bo, num_heads=NH, return_attn_weights=False
    )
    out2 = jax.block_until_ready(out2)
    assert none_w is None
    assert jnp.allclose(out2, ref_out, atol=1e-4, rtol=1e-4), "fast-path mismatch"

    print("KERNEL_OK")
</pallas_src>

<mosaic_0001>
module attributes {stable_mosaic.version = 11 : i64} {
  func.func @siglip_attention_kernel(%arg0: i32, %arg1: i32, %arg2: memref<1x8x32xf32, #tpu.memory_space<vmem>>, %arg3: memref<2x32x48xf32, #tpu.memory_space<vmem>>, %arg4: memref<2x1x48xf32, #tpu.memory_space<vmem>>, %arg5: memref<2x16x32xf32, #tpu.memory_space<vmem>>, %arg6: memref<1x32xf32, #tpu.memory_space<vmem>>, %arg7: memref<1x8x32xf32, #tpu.memory_space<vmem>>, %arg8: memref<1x2x8x8xf32, #tpu.memory_space<vmem>>, %arg9: memref<8x32xf32, #tpu.memory_space<vmem>>) attributes {dimension_semantics = [#tpu.dimension_semantics<parallel>, #tpu.dimension_semantics<arbitrary>], iteration_bounds = array<i64: 2, 2>, scalar_prefetch = 0 : i64, scratch_operands = 1 : i64, tpu.core_type = #tpu.core_type<tc>, window_params = [{transform_indices = @transform_0, window_bounds = array<i64: 1, 8, 32>}, {pipeline_mode = #tpu.pipeline_mode<synchronous>, transform_indices = @transform_1, window_bounds = array<i64: 2, 32, 48>}, {pipeline_mode = #tpu.pipeline_mode<synchronous>, transform_indices = @transform_2, window_bounds = array<i64: 2, 1, 48>}, {pipeline_mode = #tpu.pipeline_mode<synchronous>, transform_indices = @transform_3, window_bounds = array<i64: 2, 16, 32>}, {pipeline_mode = #tpu.pipeline_mode<synchronous>, transform_indices = @transform_4, window_bounds = array<i64: 1, 32>}, {transform_indices = @transform_5, window_bounds = array<i64: 1, 8, 32>}, {transform_indices = @transform_6, window_bounds = array<i64: 1, 2, 8, 8>}]} {
    %c0 = arith.constant 0 : index
    %c0_0 = arith.constant 0 : index
    %c0_1 = arith.constant 0 : index
    %0 = vector.load %arg2[%c0, %c0_0, %c0_1] : memref<1x8x32xf32, #tpu.memory_space<vmem>>, vector<1x8x32xf32>
    %1 = vector.shape_cast %0 : vector<1x8x32xf32> to vector<8x32xf32>
    %2 = arith.index_cast %arg1 : i32 to index
    %c0_2 = arith.constant 0 : index
    %c0_3 = arith.constant 0 : index
    %3 = vector.load %arg3[%2, %c0_2, %c0_3] : memref<2x32x48xf32, #tpu.memory_space<vmem>>, vector<1x32x48xf32>
    %4 = vector.shape_cast %3 : vector<1x32x48xf32> to vector<32x48xf32>
    %5 = arith.index_cast %arg1 : i32 to index
    %c0_4 = arith.constant 0 : index
    %c0_5 = arith.constant 0 : index
    %6 = vector.load %arg4[%5, %c0_4, %c0_5] : memref<2x1x48xf32, #tpu.memory_space<vmem>>, vector<1x1x48xf32>
    %7 = vector.shape_cast %6 : vector<1x1x48xf32> to vector<1x48xf32>
    %cst = arith.constant dense<0.000000e+00> : vector<8x48xf32>
    %8 = tpu.matmul %1, %4, %cst {dimension_numbers = #tpu.dot_dimension_numbers<[1], [0], [0], [1], [0, 0, 1, 1], [], []>} : vector<8x32xf32>, vector<32x48xf32>, vector<8x48xf32> -> vector<8x48xf32>
    %9 = vector.broadcast %7 : vector<1x48xf32> to vector<8x48xf32>
    %10 = arith.addf %8, %9 : vector<8x48xf32>
    %11 = vector.extract_strided_slice %10 {offsets = [0, 0], sizes = [8, 8], strides = [1, 1]} : vector<8x48xf32> to vector<8x8xf32>
    %12 = vector.extract_strided_slice %10 {offsets = [0, 8], sizes = [8, 8], strides = [1, 1]} : vector<8x48xf32> to vector<8x8xf32>
    %13 = vector.extract_strided_slice %10 {offsets = [0, 16], sizes = [8, 8], strides = [1, 1]} : vector<8x48xf32> to vector<8x8xf32>
    %cst_6 = arith.constant dense<0.000000e+00> : vector<8x8xf32>
    %14 = tpu.matmul %11, %12, %cst_6 {dimension_numbers = #tpu.dot_dimension_numbers<[1], [1], [0], [0], [0, 0, 1, 0], [], []>} : vector<8x8xf32>, vector<8x8xf32>, vector<8x8xf32> -> vector<8x8xf32>
    %cst_7 = arith.constant dense<0xFF800000> : vector<8xf32>
    %15 = vector.multi_reduction <maximumf>, %14, %cst_7 [1] : vector<8x8xf32> to vector<8xf32>
    %16 = vector.shape_cast %15 : vector<8xf32> to vector<8x1xf32>
    %17 = vector.broadcast %16 : vector<8x1xf32> to vector<8x8xf32>
    %18 = arith.subf %14, %17 : vector<8x8xf32>
    %19 = math.exp %18 : vector<8x8xf32>
    %cst_8 = arith.constant dense<0.000000e+00> : vector<8xf32>
    %20 = vector.multi_reduction <add>, %19, %cst_8 [1] : vector<8x8xf32> to vector<8xf32>
    %21 = vector.shape_cast %20 : vector<8xf32> to vector<8x1xf32>
    %22 = tpu.reciprocal %21 : vector<8x1xf32> -> vector<8x1xf32>
    %23 = vector.broadcast %22 : vector<8x1xf32> to vector<8x8xf32>
    %24 = arith.mulf %19, %23 : vector<8x8xf32>
    %c0_9 = arith.constant 0 : index
    %c0_10 = arith.constant 0 : index
    %c0_11 = arith.constant 0 : index
    %c0_12 = arith.constant 0 : index
    %25 = vector.load %arg8[%c0_9, %c0_10, %c0_11, %c0_12] : memref<1x2x8x8xf32, #tpu.memory_space<vmem>>, vector<1x1x8x8xf32>
    %26 = vector.shape_cast %25 : vector<1x1x8x8xf32> to vector<8x8xf32>
    %27 = vector.shape_cast %24 : vector<8x8xf32> to vector<1x1x8x8xf32>
    tpu.vector_store %arg8[%c0_9, %c0_10, %c0_11, %c0_12], %27 {strides = array<i32>} : memref<1x2x8x8xf32, #tpu.memory_space<vmem>>, vector<1x1x8x8xf32>,
    %cst_13 = arith.constant dense<0.000000e+00> : vector<8x8xf32>
    %28 = tpu.matmul %24, %13, %cst_13 {dimension_numbers = #tpu.dot_dimension_numbers<[1], [0], [0], [1], [0, 0, 1, 1], [], []>} : vector<8x8xf32>, vector<8x8xf32>, vector<8x8xf32> -> vector<8x8xf32>
    %29 = vector.extract_strided_slice %10 {offsets = [0, 24], sizes = [8, 8], strides = [1, 1]} : vector<8x48xf32> to vector<8x8xf32>
    %30 = vector.extract_strided_slice %10 {offsets = [0, 32], sizes = [8, 8], strides = [1, 1]} : vector<8x48xf32> to vector<8x8xf32>
    %31 = vector.extract_strided_slice %10 {offsets = [0, 40], sizes = [8, 8], strides = [1, 1]} : vector<8x48xf32> to vector<8x8xf32>
    %cst_14 = arith.constant dense<0.000000e+00> : vector<8x8xf32>
    %32 = tpu.matmul %29, %30, %cst_14 {dimension_numbers = #tpu.dot_dimension_numbers<[1], [1], [0], [0], [0, 0, 1, 0], [], []>} : vector<8x8xf32>, vector<8x8xf32>, vector<8x8xf32> -> vector<8x8xf32>
    %cst_15 = arith.constant dense<0xFF800000> : vector<8xf32>
    %33 = vector.multi_reduction <maximumf>, %32, %cst_15 [1] : vector<8x8xf32> to vector<8xf32>
    %34 = vector.shape_cast %33 : vector<8xf32> to vector<8x1xf32>
    %35 = vector.broadcast %34 : vector<8x1xf32> to vector<8x8xf32>
    %36 = arith.subf %32, %35 : vector<8x8xf32>
    %37 = math.exp %36 : vector<8x8xf32>
    %cst_16 = arith.constant dense<0.000000e+00> : vector<8xf32>
    %38 = vector.multi_reduction <add>, %37, %cst_16 [1] : vector<8x8xf32> to vector<8xf32>
    %39 = vector.shape_cast %38 : vector<8xf32> to vector<8x1xf32>
    %40 = tpu.reciprocal %39 : vector<8x1xf32> -> vector<8x1xf32>
    %41 = vector.broadcast %40 : vector<8x1xf32> to vector<8x8xf32>
    %42 = arith.mulf %37, %41 : vector<8x8xf32>
    %c0_17 = arith.constant 0 : index
    %c1 = arith.constant 1 : index
    %c0_18 = arith.constant 0 : index
    %c0_19 = arith.constant 0 : index
    %43 = vector.load %arg8[%c0_17, %c1, %c0_18, %c0_19] : memref<1x2x8x8xf32, #tpu.memory_space<vmem>>, vector<1x1x8x8xf32>
    %44 = vector.shape_cast %43 : vector<1x1x8x8xf32> to vector<8x8xf32>
    %45 = vector.shape_cast %42 : vector<8x8xf32> to vector<1x1x8x8xf32>
    tpu.vector_store %arg8[%c0_17, %c1, %c0_18, %c0_19], %45 {strides = array<i32>} : memref<1x2x8x8xf32, #tpu.memory_space<vmem>>, vector<1x1x8x8xf32>,
    %cst_20 = arith.constant dense<0.000000e+00> : vector<8x8xf32>
    %46 = tpu.matmul %42, %31, %cst_20 {dimension_numbers = #tpu.dot_dimension_numbers<[1], [0], [0], [1], [0, 0, 1, 1], [], []>} : vector<8x8xf32>, vector<8x8xf32>, vector<8x8xf32> -> vector<8x8xf32>
    %47 = tpu.concatenate %28, %46 in 1 : vector<8x8xf32>, vector<8x8xf32> -> vector<8x16xf32>
    %48 = arith.index_cast %arg1 : i32 to index
    %c0_21 = arith.constant 0 : index
    %c0_22 = arith.constant 0 : index
    %49 = vector.load %arg5[%48, %c0_21, %c0_22] : memref<2x16x32xf32, #tpu.memory_space<vmem>>, vector<1x16x32xf32>
    %50 = vector.shape_cast %49 : vector<1x16x32xf32> to vector<16x32xf32>
    %cst_23 = arith.constant dense<0.000000e+00> : vector<8x32xf32>
    %51 = tpu.matmul %47, %50, %cst_23 {dimension_numbers = #tpu.dot_dimension_numbers<[1], [0], [0], [1], [0, 0, 1, 1], [], []>} : vector<8x16xf32>, vector<16x32xf32>, vector<8x32xf32> -> vector<8x32xf32>
    %c0_i32 = arith.constant 0 : i32
    %52 = arith.cmpi eq, %arg1, %c0_i32 : i32
    %53 = arith.extui %52 : i1 to i32
    %c0_i32_24 = arith.constant 0 : i32
    %54 = arith.cmpi ne, %53, %c0_i32_24 : i32
    scf.if %54 {
      %c0_30 = arith.constant 0 : index
      %c0_31 = arith.constant 0 : index
      %61 = vector.load %arg6[%c0_30, %c0_31] : memref<1x32xf32, #tpu.memory_space<vmem>>, vector<1x32xf32>
      %62 = vector.shape_cast %61 : vector<1x32xf32> to vector<1x32xf32>
      %63 = vector.broadcast %62 : vector<1x32xf32> to vector<8x32xf32>
      %c0_32 = arith.constant 0 : index
      %c0_33 = arith.constant 0 : index
      %64 = vector.load %arg9[%c0_32, %c0_33] : memref<8x32xf32, #tpu.memory_space<vmem>>, vector<8x32xf32>
      tpu.vector_store %arg9[%c0_32, %c0_33], %63 {strides = array<i32>} : memref<8x32xf32, #tpu.memory_space<vmem>>, vector<8x32xf32>,
    } else {
    }
    %c0_25 = arith.constant 0 : index
    %c0_26 = arith.constant 0 : index
    %55 = vector.load %arg9[%c0_25, %c0_26] : memref<8x32xf32, #tpu.memory_space<vmem>>, vector<8x32xf32>
    %56 = arith.addf %55, %51 : vector<8x32xf32>
    %c0_27 = arith.constant 0 : index
    %c0_28 = arith.constant 0 : index
    %57 = vector.load %arg9[%c0_27, %c0_28] : memref<8x32xf32, #tpu.memory_space<vmem>>, vector<8x32xf32>
    tpu.vector_store %arg9[%c0_27, %c0_28], %56 {strides = array<i32>} : memref<8x32xf32, #tpu.memory_space<vmem>>, vector<8x32xf32>,
    %c1_i32 = arith.constant 1 : i32
    %58 = arith.cmpi eq, %arg1, %c1_i32 : i32
    %59 = arith.extui %58 : i1 to i32
    %c0_i32_29 = arith.constant 0 : i32
    %60 = arith.cmpi ne, %59, %c0_i32_29 : i32
    scf.if %60 {
      %c0_30 = arith.constant 0 : index
      %c0_31 = arith.constant 0 : index
      %61 = vector.load %arg9[%c0_30, %c0_31] : memref<8x32xf32, #tpu.memory_space<vmem>>, vector<8x32xf32>
      %c0_32 = arith.constant 0 : index
      %c0_33 = arith.constant 0 : index
      %c0_34 = arith.constant 0 : index
      %62 = vector.load %arg7[%c0_32, %c0_33, %c0_34] : memref<1x8x32xf32, #tpu.memory_space<vmem>>, vector<1x8x32xf32>
      %63 = vector.shape_cast %62 : vector<1x8x32xf32> to vector<8x32xf32>
      %64 = vector.shape_cast %61 : vector<8x32xf32> to vector<1x8x32xf32>
      tpu.vector_store %arg7[%c0_32, %c0_33, %c0_34], %64 {strides = array<i32>} : memref<1x8x32xf32, #tpu.memory_space<vmem>>, vector<1x8x32xf32>,
    } else {
    }
    return
  }
  func.func @transform_0(%arg0: i32, %arg1: i32) -> (i32, i32, i32) {
    %c0_i32 = arith.constant 0 : i32
    %c0_i32_0 = arith.constant 0 : i32
    %c0_i32_1 = arith.constant 0 : i32
    return %arg0, %c0_i32, %c0_i32_0 : i32, i32, i32
  }
  func.func @transform_1(%arg0: i32, %arg1: i32) -> (i32, i32, i32) {
    %c0_i32 = arith.constant 0 : i32
    %c0_i32_0 = arith.constant 0 : i32
    %c0_i32_1 = arith.constant 0 : i32
    %c0_i32_2 = arith.constant 0 : i32
    return %c0_i32, %c0_i32_0, %c0_i32_1 : i32, i32, i32
  }
  func.func @transform_2(%arg0: i32, %arg1: i32) -> (i32, i32, i32) {
    %c0_i32 = arith.constant 0 : i32
    %c0_i32_0 = arith.constant 0 : i32
    %c0_i32_1 = arith.constant 0 : i32
    %c0_i32_2 = arith.constant 0 : i32
    return %c0_i32, %c0_i32_0, %c0_i32_1 : i32, i32, i32
  }
  func.func @transform_3(%arg0: i32, %arg1: i32) -> (i32, i32, i32) {
    %c0_i32 = arith.constant 0 : i32
    %c0_i32_0 = arith.constant 0 : i32
    %c0_i32_1 = arith.constant 0 : i32
    %c0_i32_2 = arith.constant 0 : i32
    return %c0_i32, %c0_i32_0, %c0_i32_1 : i32, i32, i32
  }
  func.func @transform_4(%arg0: i32, %arg1: i32) -> (i32, i32) {
    %c0_i32 = arith.constant 0 : i32
    %c0_i32_0 = arith.constant 0 : i32
    %c0_i32_1 = arith.constant 0 : i32
    return %c0_i32, %c0_i32_0 : i32, i32
  }
  func.func @transform_5(%arg0: i32, %arg1: i32) -> (i32, i32, i32) {
    %c0_i32 = arith.constant 0 : i32
    %c0_i32_0 = arith.constant 0 : i32
    %c0_i32_1 = arith.constant 0 : i32
    return %arg0, %c0_i32, %c0_i32_0 : i32, i32, i32
  }
  func.func @transform_6(%arg0: i32, %arg1: i32) -> (i32, i32, i32, i32) {
    %c0_i32 = arith.constant 0 : i32
    %c0_i32_0 = arith.constant 0 : i32
    %c0_i32_1 = arith.constant 0 : i32
    return %arg0, %arg1, %c0_i32, %c0_i32_0 : i32, i32, i32, i32
  }
}

</mosaic_0001>

<llo_original>
// kernel: tpu_custom_call.1
$region0: #{tpu_custom_call.1}
  #allocation0 [shape = 'u32[]', space=smem, size = 0x4, offset = 0x4, fixed_abs, tag = 'smem constant byte address 0x4 - core index']
  #allocation1 [shape = 'u32[72,128]{1,0:T(1,128)}', space=vmem, size = 0x9000, scoped, tag = 'internal scratch']
  #allocation2 [shape = 'f32[8,32]{1,0:T(8,128)}', space=vmem, size = 0x1000, scoped, tag = 'scratch operand']
  %s0 = inlined_call_operand.hbm [shape: f32[2,8,32], index: 0, kind: input, shape index: {}]
  %s1 = inlined_call_operand.hbm [shape: f32[2,32,48], index: 1, kind: input, shape index: {}]
  %s2 = inlined_call_operand.hbm [shape: f32[2,1,48], index: 2, kind: input, shape index: {}]
  %s3 = inlined_call_operand.hbm [shape: f32[2,16,32], index: 3, kind: input, shape index: {}]
  %s4 = inlined_call_operand.vmem [shape: f32[1,32], index: 4, kind: input, shape index: {}]
  %s5 = inlined_call_operand.hbm [shape: f32[2,8,32], index: 5, kind: output, shape index: {0}]
  %s6 = inlined_call_operand.hbm [shape: f32[2,4,8,8], index: 6, kind: output, shape index: {1}]
  %7 = xla_tuple %s5, %s6
  %s8 = sld [smem:[#allocation0]]
  $region85: #{tpu_custom_call.1} parent=0
    _
  %s10 = ssub.s32 1, %s8
  %s11 = scalar_select 0, %s10, %s8
  $region1: #{tpu_custom_call.1} parent=0
    #allocation3 [shape = 'u8[8192]{0}', space=vmem, size = 0x2000, scoped, tag = 'input window, operand 0']
    #allocation4 [shape = 's32[2]{0}', space=sflag, size = 0x8, scoped, tag = 'scoped memory for tpu_custom_call.1']
    #allocation5 [shape = 's32[2]{0}', space=sflag, size = 0x8, scoped, tag = 'scoped memory for tpu_custom_call.1']
    #allocation6 [shape = 'u8[32768]{0}', space=vmem, size = 0x8000, scoped, tag = 'input window, operand 1, single buffered']
    #allocation7 [shape = 's32[1]{0}', space=sflag, size = 0x4, scoped, tag = 'scoped memory for tpu_custom_call.1']
    #allocation8 [shape = 'u8[1024]{0}', space=vmem, size = 0x400, scoped, tag = 'input window, operand 2, single buffered']
    #allocation9 [shape = 'u8[16384]{0}', space=vmem, size = 0x4000, scoped, tag = 'input window, operand 3, single buffered']
    #allocation10 [shape = 's32[1]{0}', space=sflag, size = 0x4, scoped, tag = 'scoped memory for tpu_custom_call.1']
    #allocation11 [shape = 'u8[8192]{0}', space=vmem, size = 0x2000, scoped, tag = 'output window, operand 0']
    #allocation12 [shape = 'u8[16384]{0}', space=vmem, size = 0x4000, scoped, tag = 'output window, operand 1']
    #allocation13 [shape = 's32[2]{0}', space=sflag, size = 0x8, scoped, tag = 'scoped memory for tpu_custom_call.1']
    %12 = vsyncpa [#allocation4], 0
    %s13 = scalar_lea.sflag [#allocation4], 1
    %14 = vsyncpa %s13, 0
    %15 = vsyncpa [#allocation7], 0
    %16 = vsyncpa [#allocation10], 0
    %17 = vsyncpa [#allocation5], 0
    %s18 = scalar_lea.sflag [#allocation5], 1
    %19 = vsyncpa %s18, 0
    %20 = vsyncpa [#allocation13], 0
    %s21 = scalar_lea.sflag [#allocation13], 1
    %22 = vsyncpa %s21, 0
    loop: start=0, step=1, limit=6
    $region2: #{tpu_custom_call.1} parent=1 // loop_pre_header
      _
    $region3: #{tpu_custom_call.1} parent=1 // loop_header
      %s24 = sphi 0, %s28
      %p25 = scmp.ge.s32.totalorder %s24, 6
      %s31 = sphi 0, %s43
      %s32 = sphi 0, %s39
      %s33 = sphi 0, %s31
      %s34 = sphi 0, %s32
      %s35 = sphi 0, %s33
      %s36 = sphi 0, %s34
      %s46 = sphi 0, %s48
      %s49 = sphi 0, %s46
      %s50 = sphi 0, %s49
      %s66 = sphi 0, %s50
      %s70 = sphi 0, %s70
      %s72 = sphi 0, %s70
      %s73 = sphi 0, %s72
      %s87 = sphi 0, %s73
      %s91 = sphi 0, %s91
      %s93 = sphi 0, %s91
      %s94 = sphi 0, %s93
      %s108 = sphi 0, %s94
      %s112 = sphi 0, %s112
      %s114 = sphi 0, %s112
      %s115 = sphi 0, %s114
      %s129 = sphi 0, %s115
      %s133 = sphi 0, %s133
      %s135 = sphi 0, %s133
      %s136 = sphi 0, %s135
      %s150 = sphi 0, %s136
      %s156 = sphi 0, %s158
      %s159 = sphi 0, %s156
      %s160 = sphi 0, %s159
      %s176 = sphi 0, %s160
      %s184 = sphi 0, %s186
      %s187 = sphi 0, %s184
      %s188 = sphi 0, %s187
      %s204 = sphi 0, %s188
    $region4: #{tpu_custom_call.1} parent=1 // loop_header_branch
      %27 = sbr.rel (%p25) target = $region8
    $region5: #{tpu_custom_call.1} parent=1 // loop_body
      %s29 = ssub.s32 %s24, 1
      %s30 = ssub.s32 %s24, 2
      %s37 = sadd.s32 1, %s32
      %p38 = scmp.ge.s32.totalorder %s37, 2
      %s39 = scalar_select %p38, 0, %s37
      %s40 = sadd.s32 1, %s31
      %s41 = scalar_select %p38, %s40, %s31
      %p42 = scmp.ge.s32.totalorder %s41, 2
      %s43 = scalar_select %p42, 0, %s41
      %s44 = ssub.s32 %s31, %s43
      %p45 = scmp.eq.s32.totalorder %s44, 0
      %s47 = sadd.s32 %s46, 1
      %s48 = scalar_select %p45, %s46, %s47
      %p51 = pneg %p45
      %p52 = scmp.eq.s32.totalorder %s24, 3
      %p53 = por %p51, %p52
      %p54 = scmp.ne.s32.totalorder %s46, %s49
      %p55 = scmp.eq.s32.totalorder %s24, 0
      %p56 = por %p54, %p55
      %p57 = scmp.ne.s32.totalorder %s46, %s49
      %p58 = scmp.eq.s32.totalorder %s29, 3
      %p59 = por %p57, %p58
      %p60 = scmp.ne.s32.totalorder %s49, %s50
      %p61 = scmp.eq.s32.totalorder %s29, 0
      %p62 = por %p60, %p61
      %p63 = scmp.ne.s32.totalorder %s49, %s50
      %p64 = scmp.eq.s32.totalorder %s30, 3
      %p65 = por %p63, %p64
      %p67 = scmp.ne.s32.totalorder %s50, %s66
      %p68 = scmp.eq.s32.totalorder %s30, 0
      %p69 = por %p67, %p68
      %s71 = sadd.s32 %s70, 1
      %p74 = scmp.eq.s32.totalorder %s24, 3
      %p75 = scmp.ne.s32.totalorder %s70, %s72
      %p76 = scmp.eq.s32.totalorder %s24, 0
      %p77 = por %p75, %p76
      %p78 = scmp.ne.s32.totalorder %s70, %s72
      %p79 = scmp.eq.s32.totalorder %s29, 3
      %p80 = por %p78, %p79
      %p81 = scmp.ne.s32.totalorder %s72, %s73
      %p82 = scmp.eq.s32.totalorder %s29, 0
      %p83 = por %p81, %p82
      %p84 = scmp.ne.s32.totalorder %s72, %s73
      %p85 = scmp.eq.s32.totalorder %s30, 3
      %p86 = por %p84, %p85
      %p88 = scmp.ne.s32.totalorder %s73, %s87
      %p89 = scmp.eq.s32.totalorder %s30, 0
      %p90 = por %p88, %p89
      %s92 = sadd.s32 %s91, 1
      %p95 = scmp.eq.s32.totalorder %s24, 3
      %p96 = scmp.ne.s32.totalorder %s91, %s93
      %p97 = scmp.eq.s32.totalorder %s24, 0
      %p98 = por %p96, %p97
      %p99 = scmp.ne.s32.totalorder %s91, %s93
      %p100 = scmp.eq.s32.totalorder %s29, 3
      %p101 = por %p99, %p100
      %p102 = scmp.ne.s32.totalorder %s93, %s94
      %p103 = scmp.eq.s32.totalorder %s29, 0
      %p104 = por %p102, %p103
      %p105 = scmp.ne.s32.totalorder %s93, %s94
      %p106 = scmp.eq.s32.totalorder %s30, 3
      %p107 = por %p105, %p106
      %p109 = scmp.ne.s32.totalorder %s94, %s108
      %p110 = scmp.eq.s32.totalorder %s30, 0
      %p111 = por %p109, %p110
      %s113 = sadd.s32 %s112, 1
      %p116 = scmp.eq.s32.totalorder %s24, 3
      %p117 = scmp.ne.s32.totalorder %s112, %s114
      %p118 = scmp.eq.s32.totalorder %s24, 0
      %p119 = por %p117, %p118
      %p120 = scmp.ne.s32.totalorder %s112, %s114
      %p121 = scmp.eq.s32.totalorder %s29, 3
      %p122 = por %p120, %p121
      %p123 = scmp.ne.s32.totalorder %s114, %s115
      %p124 = scmp.eq.s32.totalorder %s29, 0
      %p125 = por %p123, %p124
      %p126 = scmp.ne.s32.totalorder %s114, %s115
      %p127 = scmp.eq.s32.totalorder %s30, 3
      %p128 = por %p126, %p127
      %p130 = scmp.ne.s32.totalorder %s115, %s129
      %p131 = scmp.eq.s32.totalorder %s30, 0
      %p132 = por %p130, %p131
      %s134 = sadd.s32 %s133, 1
      %p137 = scmp.eq.s32.totalorder %s24, 3
      %p138 = scmp.ne.s32.totalorder %s133, %s135
      %p139 = scmp.eq.s32.totalorder %s24, 0
      %p140 = por %p138, %p139
      %p141 = scmp.ne.s32.totalorder %s133, %s135
      %p142 = scmp.eq.s32.totalorder %s29, 3
      %p143 = por %p141, %p142
      %p144 = scmp.ne.s32.totalorder %s135, %s136
      %p145 = scmp.eq.s32.totalorder %s29, 0
      %p146 = por %p144, %p145
      %p147 = scmp.ne.s32.totalorder %s135, %s136
      %p148 = scmp.eq.s32.totalorder %s30, 3
      %p149 = por %p147, %p148
      %p151 = scmp.ne.s32.totalorder %s136, %s150
      %p152 = scmp.eq.s32.totalorder %s30, 0
      %p153 = por %p151, %p152
      %s154 = ssub.s32 %s31, %s43
      %p155 = scmp.eq.s32.totalorder %s154, 0
      %s157 = sadd.s32 %s156, 1
      %s158 = scalar_select %p155, %s156, %s157
      %p161 = pneg %p155
      %p162 = scmp.eq.s32.totalorder %s24, 3
      %p163 = por %p161, %p162
      %p164 = scmp.ne.s32.totalorder %s156, %s159
      %p165 = scmp.eq.s32.totalorder %s24, 0
      %p166 = por %p164, %p165
      %p167 = scmp.ne.s32.totalorder %s156, %s159
      %p168 = scmp.eq.s32.totalorder %s29, 3
      %p169 = por %p167, %p168
      %p170 = scmp.ne.s32.totalorder %s159, %s160
      %p171 = scmp.eq.s32.totalorder %s29, 0
      %p172 = por %p170, %p171
      %p173 = scmp.ne.s32.totalorder %s159, %s160
      %p174 = scmp.eq.s32.totalorder %s30, 3
      %p175 = por %p173, %p174
      %p177 = scmp.ne.s32.totalorder %s160, %s176
      %p178 = scmp.eq.s32.totalorder %s30, 0
      %p179 = por %p177, %p178
      %s180 = ssub.s32 %s31, %s43
      %s181 = ssub.s32 %s32, %s39
      %s182 = sor.u32 %s180, %s181
      %p183 = scmp.eq.s32.totalorder %s182, 0
      %s185 = sadd.s32 %s184, 1
      %s186 = scalar_select %p183, %s184, %s185
      %p189 = pneg %p183
      %p190 = scmp.eq.s32.totalorder %s24, 3
      %p191 = por %p189, %p190
      %p192 = scmp.ne.s32.totalorder %s184, %s187
      %p193 = scmp.eq.s32.totalorder %s24, 0
      %p194 = por %p192, %p193
      %p195 = scmp.ne.s32.totalorder %s184, %s187
      %p196 = scmp.eq.s32.totalorder %s29, 3
      %p197 = por %p195, %p196
      %p198 = scmp.ne.s32.totalorder %s187, %s188
      %p199 = scmp.eq.s32.totalorder %s29, 0
      %p200 = por %p198, %p199
      %p201 = scmp.ne.s32.totalorder %s187, %s188
      %p202 = scmp.eq.s32.totalorder %s30, 3
      %p203 = por %p201, %p202
      %p205 = scmp.ne.s32.totalorder %s188, %s204
      %p206 = scmp.eq.s32.totalorder %s30, 0
      %p207 = por %p205, %p206
      %p208 = scmp.le.s32.totalorder 1, %s24
      %p209 = scmp.lt.s32.totalorder %s24, 5
      %p210 = pnand %p208, %p209
      %p211 = pneg %p210
      // Predicated region
      $region9: #{tpu_custom_call.1} parent=5 // pred_check
        _
      $region10: #{tpu_custom_call.1} parent=5 // pred_check_branch
        %213 = sbr.rel (%p210) target = $region12
      $region11: #{tpu_custom_call.1} parent=5 // pred_region
        %s214 = ssub.s32 %s24, 1
        // Predicated region
        $region13: #{tpu_custom_call.1} parent=11 // pred_check
          %p215 = pneg %p83
        $region14: #{tpu_custom_call.1} parent=11 // pred_check_branch
          %217 = sbr.rel (%p215) target = $region16
        $region15: #{tpu_custom_call.1} parent=11 // pred_region
          %219 = vsyncadd [#allocation7], 0
          %s220 = sshll.u32 %s1, 4
          %s221 = int_to_ptr.hbm [resolvable:$true] %s220
          %s222 = sshll.u32 [#allocation6], 4
          %s223 = int_to_ptr.vmem [resolvable:$true] %s222
          %228 = dma.hbm_to_vmem [thread:$0]  %s221, 1024, %s223, [#allocation7], 128, 128, 8
        $region16: #{tpu_custom_call.1} parent=11 // pred_fallthru
          _
        // Predicated region
        $region17: #{tpu_custom_call.1} parent=11 // pred_check
          %p229 = pneg %p104
        $region18: #{tpu_custom_call.1} parent=11 // pred_check_branch
          %231 = sbr.rel (%p229) target = $region20
        $region19: #{tpu_custom_call.1} parent=11 // pred_region
          %233 = vsyncadd [#allocation7], 0
          %s234 = sshll.u32 %s2, 4
          %s235 = int_to_ptr.hbm [resolvable:$true] %s234
          %s236 = sshll.u32 [#allocation8], 4
          %s237 = int_to_ptr.vmem [resolvable:$true] %s236
          %242 = dma.hbm_to_vmem [thread:$0]  %s235, 32, %s237, [#allocation7], 16, 16, 1
        $region20: #{tpu_custom_call.1} parent=11 // pred_fallthru
          _
        // Predicated region
        $region21: #{tpu_custom_call.1} parent=11 // pred_check
          %p243 = pneg %p125
        $region22: #{tpu_custom_call.1} parent=11 // pred_check_branch
          %245 = sbr.rel (%p243) target = $region24
        $region23: #{tpu_custom_call.1} parent=11 // pred_region
          %247 = vsyncadd [#allocation10], 0
          %s248 = sshll.u32 %s3, 4
          %s249 = int_to_ptr.hbm [resolvable:$true] %s248
          %s250 = sshll.u32 [#allocation9], 4
          %s251 = int_to_ptr.vmem [resolvable:$true] %s250
          %256 = dma.hbm_to_vmem [thread:$0]  %s249, 512, %s251, [#allocation10], 128, 128, 8
        $region24: #{tpu_custom_call.1} parent=11 // pred_fallthru
          _
        // Predicated region
        $region25: #{tpu_custom_call.1} parent=11 // pred_check
          %p257 = pneg %p146
        $region26: #{tpu_custom_call.1} parent=11 // pred_check_branch
          %259 = sbr.rel (%p257) target = $region28
        $region27: #{tpu_custom_call.1} parent=11 // pred_region
          _
        $region28: #{tpu_custom_call.1} parent=11 // pred_fallthru
          _
      $region12: #{tpu_custom_call.1} parent=5 // pred_fallthru
        _
      %p260 = scmp.lt.s32.totalorder %s24, 4
      // Predicated region
      $region29: #{tpu_custom_call.1} parent=5 // pred_check
        %p261 = pneg %p260
      $region30: #{tpu_custom_call.1} parent=5 // pred_check_branch
        %263 = sbr.rel (%p261) target = $region32
      $region31: #{tpu_custom_call.1} parent=5 // pred_region
        // Predicated region
        $region33: #{tpu_custom_call.1} parent=31 // pred_check
          %p264 = pneg %p56
        $region34: #{tpu_custom_call.1} parent=31 // pred_check_branch
          %266 = sbr.rel (%p264) target = $region36
        $region35: #{tpu_custom_call.1} parent=31 // pred_region
          %s267 = sand.u32 %s46, 1
          %s268 = scalar_lea.sflag [#allocation4], %s267
          %s269 = sand.u32 %s46, 1
          %s270 = smul.addr %s269, 8
          %s271 = scalar_lea.vmem [#allocation3], %s270
          %273 = vsyncadd %s268, 0
          %s274 = smul.addr %s31, 8
          %s275 = scalar_lea.hbm %s0, %s274
          %s277 = sshll.u32 %s275, 4
          %s278 = int_to_ptr.hbm [resolvable:$true] %s277
          %s279 = sshll.u32 %s271, 4
          %s280 = int_to_ptr.vmem [resolvable:$true] %s279
          %282 = dma.hbm_to_vmem [thread:$0]  %s278, 128, %s280, %s268
        $region36: #{tpu_custom_call.1} parent=31 // pred_fallthru
          _
      $region32: #{tpu_custom_call.1} parent=5 // pred_fallthru
        _
      %p283 = scmp.le.s32.totalorder 1, %s24
      %p284 = scmp.lt.s32.totalorder %s24, 5
      %p285 = pnand %p283, %p284
      %p286 = pneg %p285
      // Predicated region
      $region37: #{tpu_custom_call.1} parent=5 // pred_check
        _
      $region38: #{tpu_custom_call.1} parent=5 // pred_check_branch
        %288 = sbr.rel (%p285) target = $region40
      $region39: #{tpu_custom_call.1} parent=5 // pred_region
        %s289 = ssub.s32 %s24, 1
        %s290 = sand.u32 %s49, 1
        %s291 = scalar_lea.sflag [#allocation4], %s290
        %s292 = sand.u32 %s49, 1
        %s293 = smul.addr %s292, 8
        %s294 = scalar_lea.vmem [#allocation3], %s293
        // Predicated region
        $region41: #{tpu_custom_call.1} parent=39 // pred_check
          %p295 = pneg %p62
        $region42: #{tpu_custom_call.1} parent=39 // pred_check_branch
          %297 = sbr.rel (%p295) target = $region44
        $region43: #{tpu_custom_call.1} parent=39 // pred_region
          %299 = dma.done %s291, 128
        $region44: #{tpu_custom_call.1} parent=39 // pred_fallthru
          _
        // Predicated region
        $region45: #{tpu_custom_call.1} parent=39 // pred_check
          %p300 = pneg %p83
        $region46: #{tpu_custom_call.1} parent=39 // pred_check_branch
          %302 = sbr.rel (%p300) target = $region48
        $region47: #{tpu_custom_call.1} parent=39 // pred_region
          %304 = dma.done [#allocation7], 1024
        $region48: #{tpu_custom_call.1} parent=39 // pred_fallthru
          _
        // Predicated region
        $region49: #{tpu_custom_call.1} parent=39 // pred_check
          %p305 = pneg %p104
        $region50: #{tpu_custom_call.1} parent=39 // pred_check_branch
          %307 = sbr.rel (%p305) target = $region52
        $region51: #{tpu_custom_call.1} parent=39 // pred_region
          %309 = dma.done [#allocation7], 32
        $region52: #{tpu_custom_call.1} parent=39 // pred_fallthru
          _
        // Predicated region
        $region53: #{tpu_custom_call.1} parent=39 // pred_check
          %p310 = pneg %p125
        $region54: #{tpu_custom_call.1} parent=39 // pred_check_branch
          %312 = sbr.rel (%p310) target = $region56
        $region55: #{tpu_custom_call.1} parent=39 // pred_region
          %314 = dma.done [#allocation10], 512
        $region56: #{tpu_custom_call.1} parent=39 // pred_fallthru
          _
        %s315 = sand.u32 %s49, 1
        %s316 = scalar_lea.sflag [#allocation4], %s315
        %s317 = sand.u32 %s49, 1
        %s318 = smul.addr %s317, 8
        %s319 = scalar_lea.vmem [#allocation3], %s318
        %p320 = pneg %p62
        %p321 = pneg %p59
        %p322 = pneg %p83
        %p323 = pneg %p80
        %p324 = pneg %p104
        %p325 = pneg %p101
        %p326 = pneg %p125
        %p327 = pneg %p122
        %p328 = pneg %p146
        %p329 = pneg %p143
        %p330 = pneg %p172
        %p331 = pneg %p169
        %s332 = sand.u32 %s159, 1
        %s333 = scalar_lea.sflag [#allocation5], %s332
        %s334 = sand.u32 %s159, 1
        %s335 = smul.addr %s334, 8
        %s336 = scalar_lea.vmem [#allocation11], %s335
        %p337 = pneg %p200
        %p338 = pneg %p197
        %s339 = sand.u32 %s187, 1
        %s340 = scalar_lea.sflag [#allocation13], %s339
        %s341 = sand.u32 %s187, 1
        %s342 = smul.addr %s341, 16
        %s343 = scalar_lea.vmem [#allocation12], %s342
        %s344 = smul.u32 2, %s34
        %v345 = vld [vmem:[%s294] sm:$0xff]
        %s346 = smul.u32 %s34, 32
        %s347 = scalar_lea.vmem [#allocation6], %s346
        %v348 = vld [vmem:[%s347] sm:$0xff]
        %v349 = vld [vmem:[%s347 + $0x8] sm:$0xff]
        %v350 = vld [vmem:[%s347 + $0x10] sm:$0xff]
        %v351 = vld [vmem:[%s347 + $0x18] sm:$0xff]
        %s352 = scalar_lea.vmem [#allocation8], %s34
        %v353 = vld [vmem:[%s352] sm:$0x1]
        %v355 = vperm.slane %v353, 0
        %vm357 = vcmask 261120
        %v359 = vsel %vm357, %v345, 0
        %361 = vmatpush.msra.mxu0 0.0
        %362 = vmatpush.msra.mxu0 0.0
        %363 = vmatpush.msra.mxu0 0.0
        %364 = vmatpush.msra.mxu0 0.0
        %365 = vmatpush.msra.mxu0 0.0
        %366 = vmatpush.msra.mxu0 0.0
        %367 = vmatpush.msra.mxu0 0.0
        %368 = vmatpush.msra.mxu0 0.0
        %369 = vmatpush.msra.mxu0 0.0
        %370 = vmatpush.msra.mxu0 0.0
        %371 = vmatpush.msra.mxu0 0.0
        %372 = vmatpush.msra.mxu0 0.0
        %373 = vmatpush.msra.mxu0 %v351
        %374 = vmatpush.msra.mxu0 %v350
        %375 = vmatpush.msra.mxu0 %v349
        %376 = vmatpush.msra.mxu0 %v348
        %377 = vmatmul.f32.gmra.mxu0 %v359
        %v378 = vpop.f32.mrf.mxu0
        %v379 = vadd.f32 %v355, %v378
        %380 = vdwg.mxu0
        %382 = vrot.lane.b32.xlu0 %v379, 120
        %v383 = vpop.permute.xlu0 %382
        %vm384 = vcmask 64512
        %v385 = vsel %vm384, %v379, 0
        %v387 = vsel %vm384, %v383, 0
        %389 = vmatpush.xpose.msra.mxu0 0.0
        %390 = vmatpush.xpose.msra.mxu0 0.0
        %391 = vmatpush.xpose.msra.mxu0 0.0
        %392 = vmatpush.xpose.msra.mxu0 0.0
        %393 = vmatpush.xpose.msra.mxu0 0.0
        %394 = vmatpush.xpose.msra.mxu0 0.0
        %395 = vmatpush.xpose.msra.mxu0 0.0
        %396 = vmatpush.xpose.msra.mxu0 0.0
        %397 = vmatpush.xpose.msra.mxu0 0.0
        %398 = vmatpush.xpose.msra.mxu0 0.0
        %399 = vmatpush.xpose.msra.mxu0 0.0
        %400 = vmatpush.xpose.msra.mxu0 0.0
        %401 = vmatpush.xpose.msra.mxu0 0.0
        %402 = vmatpush.xpose.msra.mxu0 0.0
        %403 = vmatpush.xpose.msra.mxu0 0.0
        %404 = vmatpush.xpose.msra.mxu0 %v387
        %405 = vmatmul.f32.gmra.mxu0 %v385
        %v406 = vpop.f32.mrf.mxu0
        %v407 = vadd.f32 0.0, %v406
        %408 = vdwg.mxu0
        %v409 = vsel %vm384, %v407, -inf
        %410 = vmax.xlane.f32.xlu0 %v409
        %v411 = vpop.xlane.xlu0 %410
        %v412 = vsub.f32 %v407, %v411
        %v413 = vmul.f32 %v412, 1.442695
        %v414 = vpow.pop %v413
        %v415 = vsel %vm384, %v414, 0.0
        %416 = vadd.xlane.f32.xlu0 %v415
        %v417 = vpop.xlane.xlu0 %416
        %v418 = vrcp.pop %v417
        %v419 = vmul.f32 %v417, %v418
        %v420 = vsub.f32 1.0, %v419
        %v421 = vmul.f32 %v418, %v420
        %v422 = vadd.f32 %v418, %v421
        %vm423 = vweird.f32 %v417
        %vm424 = vweird.f32 %v418
        %vm425 = vmor %vm423, %vm424
        %v426 = vsel %vm425, %v418, %v422
        %v427 = vand.u32 2147483647, %v417
        %vm428 = vcmp.eq.f32.partialorder %v427, 8.507059e+37
        %v429 = vand.u32 %v417, 2147483648
        %v430 = vor.u32 1.1754944e-38, %v429
        %v431 = vsel %vm428, %v430, %v426
        %v432 = vmul.f32 %v414, %v431
        %433 = vst.msk [vmem:[%s343] sm:$0xff] %vm384, %v432
        %434 = vrot.lane.b32.xlu0 %v379, 112
        %v435 = vpop.permute.xlu0 %434
        %v438 = vsel %vm384, %v432, 0
        %440 = vmatpush.msra.mxu0 0.0
        %441 = vmatpush.msra.mxu0 0.0
        %442 = vmatpush.msra.mxu0 0.0
        %443 = vmatpush.msra.mxu0 0.0
        %444 = vmatpush.msra.mxu0 0.0
        %445 = vmatpush.msra.mxu0 0.0
        %446 = vmatpush.msra.mxu0 0.0
        %447 = vmatpush.msra.mxu0 0.0
        %448 = vmatpush.msra.mxu0 0.0
        %449 = vmatpush.msra.mxu0 0.0
        %450 = vmatpush.msra.mxu0 0.0
        %451 = vmatpush.msra.mxu0 0.0
        %452 = vmatpush.msra.mxu0 0.0
        %453 = vmatpush.msra.mxu0 0.0
        %454 = vmatpush.msra.mxu0 0.0
        %455 = vmatpush.msra.mxu0 %v435
        %456 = vmatmul.f32.gmra.mxu0 %v438
        %v457 = vpop.f32.mrf.mxu0
        %v458 = vadd.f32 0.0, %v457
        %459 = vdwg.mxu0
        %460 = vrot.lane.b32.xlu0 %v379, 104
        %v461 = vpop.permute.xlu0 %460
        %462 = vrot.lane.b32.xlu0 %v379, 96
        %v463 = vpop.permute.xlu0 %462
        %v464 = vsel %vm384, %v461, 0
        %v466 = vsel %vm384, %v463, 0
        %468 = vmatpush.xpose.msra.mxu0 0.0
        %469 = vmatpush.xpose.msra.mxu0 0.0
        %470 = vmatpush.xpose.msra.mxu0 0.0
        %471 = vmatpush.xpose.msra.mxu0 0.0
        %472 = vmatpush.xpose.msra.mxu0 0.0
        %473 = vmatpush.xpose.msra.mxu0 0.0
        %474 = vmatpush.xpose.msra.mxu0 0.0
        %475 = vmatpush.xpose.msra.mxu0 0.0
        %476 = vmatpush.xpose.msra.mxu0 0.0
        %477 = vmatpush.xpose.msra.mxu0 0.0
        %478 = vmatpush.xpose.msra.mxu0 0.0
        %479 = vmatpush.xpose.msra.mxu0 0.0
        %480 = vmatpush.xpose.msra.mxu0 0.0
        %481 = vmatpush.xpose.msra.mxu0 0.0
        %482 = vmatpush.xpose.msra.mxu0 0.0
        %483 = vmatpush.xpose.msra.mxu0 %v466
        %484 = vmatmul.f32.gmra.mxu0 %v464
        %v485 = vpop.f32.mrf.mxu0
        %v486 = vadd.f32 0.0, %v485
        %487 = vdwg.mxu0
        %v488 = vsel %vm384, %v486, -inf
        %489 = vmax.xlane.f32.xlu0 %v488
        %v490 = vpop.xlane.xlu0 %489
        %v491 = vsub.f32 %v486, %v490
        %v492 = vmul.f32 %v491, 1.442695
        %v493 = vpow.pop %v492
        %v494 = vsel %vm384, %v493, 0.0
        %495 = vadd.xlane.f32.xlu0 %v494
        %v496 = vpop.xlane.xlu0 %495
        %v497 = vrcp.pop %v496
        %v498 = vmul.f32 %v496, %v497
        %v499 = vsub.f32 1.0, %v498
        %v500 = vmul.f32 %v497, %v499
        %v501 = vadd.f32 %v497, %v500
        %vm502 = vweird.f32 %v496
        %vm503 = vweird.f32 %v497
        %vm504 = vmor %vm502, %vm503
        %v505 = vsel %vm504, %v497, %v501
        %v506 = vand.u32 2147483647, %v496
        %vm507 = vcmp.eq.f32.partialorder %v506, 8.507059e+37
        %v508 = vand.u32 %v496, 2147483648
        %v509 = vor.u32 1.1754944e-38, %v508
        %v510 = vsel %vm507, %v509, %v505
        %v511 = vmul.f32 %v493, %v510
        %s512 = scalar_lea.vmem %s343, 8 [#allocation12]
        %513 = vst.msk [vmem:[%s512] sm:$0xff] %vm384, %v511
        %514 = vrot.lane.b32.xlu0 %v379, 88
        %v515 = vpop.permute.xlu0 %514
        %v518 = vsel %vm384, %v511, 0
        %520 = vmatpush.msra.mxu0 0.0
        %521 = vmatpush.msra.mxu0 0.0
        %522 = vmatpush.msra.mxu0 0.0
        %523 = vmatpush.msra.mxu0 0.0
        %524 = vmatpush.msra.mxu0 0.0
        %525 = vmatpush.msra.mxu0 0.0
        %526 = vmatpush.msra.mxu0 0.0
        %527 = vmatpush.msra.mxu0 0.0
        %528 = vmatpush.msra.mxu0 0.0
        %529 = vmatpush.msra.mxu0 0.0
        %530 = vmatpush.msra.mxu0 0.0
        %531 = vmatpush.msra.mxu0 0.0
        %532 = vmatpush.msra.mxu0 0.0
        %533 = vmatpush.msra.mxu0 0.0
        %534 = vmatpush.msra.mxu0 0.0
        %535 = vmatpush.msra.mxu0 %v515
        %536 = vmatmul.f32.gmra.mxu0 %v518
        %v537 = vpop.f32.mrf.mxu0
        %v538 = vadd.f32 0.0, %v537
        %539 = vdwg.mxu0
        %541 = vrot.lane.b32.xlu0 %v538, 8
        %v542 = vpop.permute.xlu0 %541
        %v544 = vsel %vm384, %v458, %v542
        %s545 = smul.u32 %s34, 16
        %s546 = scalar_lea.vmem [#allocation9], %s545
        %v547 = vld [vmem:[%s546] sm:$0xff]
        %v548 = vld [vmem:[%s546 + $0x8] sm:$0xff]
        %vm549 = vcmask 130048
        %v551 = vsel %vm549, %v544, 0
        %553 = vmatpush.msra.mxu0 0.0
        %554 = vmatpush.msra.mxu0 0.0
        %555 = vmatpush.msra.mxu0 0.0
        %556 = vmatpush.msra.mxu0 0.0
        %557 = vmatpush.msra.mxu0 0.0
        %558 = vmatpush.msra.mxu0 0.0
        %559 = vmatpush.msra.mxu0 0.0
        %560 = vmatpush.msra.mxu0 0.0
        %561 = vmatpush.msra.mxu0 0.0
        %562 = vmatpush.msra.mxu0 0.0
        %563 = vmatpush.msra.mxu0 0.0
        %564 = vmatpush.msra.mxu0 0.0
        %565 = vmatpush.msra.mxu0 0.0
        %566 = vmatpush.msra.mxu0 0.0
        %567 = vmatpush.msra.mxu0 %v548
        %568 = vmatpush.msra.mxu0 %v547
        %569 = vmatmul.f32.gmra.mxu0 %v551
        %v570 = vpop.f32.mrf.mxu0
        %v571 = vadd.f32 0.0, %v570
        %572 = vdwg.mxu0
        %p573 = scmp.eq.s32.totalorder %s34, 0
        // Predicated region
        $region57: #{tpu_custom_call.1} parent=39 // pred_check
          %p574 = pneg %p573
        $region58: #{tpu_custom_call.1} parent=39 // pred_check_branch
          %576 = sbr.rel (%p574) target = $region60
        $region59: #{tpu_custom_call.1} parent=39 // pred_region
          %v577 = vld [vmem:[%s4] sm:$0x1]
          %v579 = vperm.slane %v577, 0
          %581 = vst.msk [vmem:[#allocation2] sm:$0xff] %vm357, %v579
        $region60: #{tpu_custom_call.1} parent=39 // pred_fallthru
          _
        %v582 = vld [vmem:[#allocation2] sm:$0xff]
        %v583 = vadd.f32 %v582, %v571
        %584 = vst.msk [vmem:[#allocation2] sm:$0xff] %vm357, %v583
        %p585 = scmp.eq.s32.totalorder %s34, 1
        // Predicated region
        $region61: #{tpu_custom_call.1} parent=39 // pred_check
          %p586 = pneg %p585
        $region62: #{tpu_custom_call.1} parent=39 // pred_check_branch
          %588 = sbr.rel (%p586) target = $region64
        $region63: #{tpu_custom_call.1} parent=39 // pred_region
          %v589 = vld [vmem:[#allocation2] sm:$0xff]
          %590 = vst.msk [vmem:[%s336] sm:$0xff] %vm357, %v589
        $region64: #{tpu_custom_call.1} parent=39 // pred_fallthru
          _
        %s591 = sand.u32 %s159, 1
        %s592 = scalar_lea.sflag [#allocation5], %s591
        %s593 = sand.u32 %s159, 1
        %s594 = smul.addr %s593, 8
        %s595 = scalar_lea.vmem [#allocation11], %s594
        %s596 = sand.u32 %s187, 1
        %s597 = scalar_lea.sflag [#allocation13], %s596
        %s598 = sand.u32 %s187, 1
        %s599 = smul.addr %s598, 16
        %s600 = scalar_lea.vmem [#allocation12], %s599
        // Predicated region
        $region65: #{tpu_custom_call.1} parent=39 // pred_check
          %p601 = pneg %p169
        $region66: #{tpu_custom_call.1} parent=39 // pred_check_branch
          %603 = sbr.rel (%p601) target = $region68
        $region67: #{tpu_custom_call.1} parent=39 // pred_region
          %605 = vsyncadd %s592, 0
          %s606 = smul.addr %s33, 8
          %s607 = scalar_lea.hbm %s5, %s606
          %s609 = sshll.u32 %s595, 4
          %s610 = int_to_ptr.vmem [resolvable:$true] %s609
          %s611 = sshll.u32 %s607, 4
          %s612 = int_to_ptr.hbm [resolvable:$true] %s611
          %614 = dma.vmem_to_hbm [thread:$0]  %s610, 128, %s612, %s592
        $region68: #{tpu_custom_call.1} parent=39 // pred_fallthru
          _
        // Predicated region
        $region69: #{tpu_custom_call.1} parent=39 // pred_check
          %p615 = pneg %p197
        $region70: #{tpu_custom_call.1} parent=39 // pred_check_branch
          %617 = sbr.rel (%p615) target = $region72
        $region71: #{tpu_custom_call.1} parent=39 // pred_region
          %s618 = smul.u32 2, %s34
          %620 = vsyncadd %s597, 0
          %s621 = smul.addr %s33, 4
          %s622 = sadd.s32 %s618, %s621
          %s623 = smul.addr %s622, 8
          %s624 = scalar_lea.hbm %s6, %s623
          %s625 = sshll.u32 %s600, 4
          %s626 = int_to_ptr.vmem [resolvable:$true] %s625
          %s627 = sshll.u32 %s624, 4
          %s628 = int_to_ptr.hbm [resolvable:$true] %s627
          %633 = dma.vmem_to_hbm [thread:$0]  %s626, 256, %s628, %s597, 128, 128, 8
        $region72: #{tpu_custom_call.1} parent=39 // pred_fallthru
          _
      $region40: #{tpu_custom_call.1} parent=5 // pred_fallthru
        _
      %p634 = scmp.le.s32.totalorder 2, %s24
      // Predicated region
      $region73: #{tpu_custom_call.1} parent=5 // pred_check
        %p635 = pneg %p634
      $region74: #{tpu_custom_call.1} parent=5 // pred_check_branch
        %637 = sbr.rel (%p635) target = $region76
      $region75: #{tpu_custom_call.1} parent=5 // pred_region
        %s638 = ssub.s32 %s24, 2
        // Predicated region
        $region77: #{tpu_custom_call.1} parent=75 // pred_check
          %p639 = pneg %p175
        $region78: #{tpu_custom_call.1} parent=75 // pred_check_branch
          %641 = sbr.rel (%p639) target = $region80
        $region79: #{tpu_custom_call.1} parent=75 // pred_region
          %s642 = sand.u32 %s160, 1
          %s643 = scalar_lea.sflag [#allocation5], %s642
          %s644 = sand.u32 %s160, 1
          %s645 = smul.addr %s644, 8
          %s646 = scalar_lea.vmem [#allocation11], %s645
          %648 = dma.done %s643, 128
        $region80: #{tpu_custom_call.1} parent=75 // pred_fallthru
          _
        // Predicated region
        $region81: #{tpu_custom_call.1} parent=75 // pred_check
          %p649 = pneg %p203
        $region82: #{tpu_custom_call.1} parent=75 // pred_check_branch
          %651 = sbr.rel (%p649) target = $region84
        $region83: #{tpu_custom_call.1} parent=75 // pred_region
          %s652 = sand.u32 %s188, 1
          %s653 = scalar_lea.sflag [#allocation13], %s652
          %s654 = sand.u32 %s188, 1
          %s655 = smul.addr %s654, 16
          %s656 = scalar_lea.vmem [#allocation12], %s655
          %658 = dma.done %s653, 256
        $region84: #{tpu_custom_call.1} parent=75 // pred_fallthru
          _
      $region76: #{tpu_custom_call.1} parent=5 // pred_fallthru
        _
    $region6: #{tpu_custom_call.1} parent=1 // loop_footer
      %s28 = sadd.s32 1, %s24
    $region7: #{tpu_custom_call.1} parent=1 // loop_footer_branch
      %23 = sbr.rel target = $region3
    $region8: #{tpu_custom_call.1} parent=1 // loop_exit
      _
    %659 = vsyncpa [#allocation4], 1
    %s660 = scalar_lea.sflag [#allocation4], 1
    %661 = vsyncpa %s660, 1
    %662 = vsyncpa [#allocation7], 1
    %663 = vsyncpa [#allocation10], 1
    %664 = vsyncpa [#allocation5], 1
    %s665 = scalar_lea.sflag [#allocation5], 1
    %666 = vsyncpa %s665, 1
    %667 = vsyncpa [#allocation13], 1
    %s668 = scalar_lea.sflag [#allocation13], 1
    %669 = vsyncpa %s668, 1

</llo_original>
